<compile_context>
chip_gen: v5e
topology: v5e:2x2
jax: 0.10.0
libtpu: 0.0.40
codegen_flags: <defaults>
</compile_context>

<pallas_src>
import functools

import jax
import jax.numpy as jnp
from jax import lax
from jax.experimental import pallas as pl
from jax.experimental.pallas import tpu as pltpu

_LANES = 128
_MAX_BLOCK_ROWS = 2048
_FALLBACK_VMEM_BYTES = 64 * 1024 * 1024   # conservative (v7x-sized) fallback


def _sublane(itemsize):
    # Sublane packing multiple per dtype width (f32: 8, bf16: 16, int8: 32).
    return {4: 8, 2: 16, 1: 32}.get(itemsize, 8)


def _vmem_capacity_bytes():
    try:
        return int(pltpu.get_tpu_info().vmem_capacity_bytes)
    except Exception:
        return _FALLBACK_VMEM_BYTES


def _round_up(x, m):
    return ((x + m - 1) // m) * m


def _pick_block_rows(n, c, itemsize, vmem_capacity):
    """Largest batch-tile whose inputs + f32 working set fit the VMEM budget."""
    sub = _sublane(itemsize)
    # Per-row VMEM cost of one grid step:
    #   * 2 inputs x 2 pipeline buffers of (TN, C) in the input dtype
    #   * ~4 x (TN, C) f32 temporaries for the in-kernel math (z1, z2, e2, e2*d)
    per_row = 2 * 2 * c * itemsize + 4 * c * 4
    budget = int(vmem_capacity * 0.45)
    tn = budget // max(per_row, 1)
    tn = max(sub, min(_MAX_BLOCK_ROWS, (tn // sub) * sub))
    if tn >= n:
        # Whole batch fits in one tile.  Split into two sublane-aligned tiles
        # anyway so the "parallel" grid axis can shard across both
        # TensorCores on v7x (harmless on single-TC v5e/v6e).
        if n > sub:
            return min(n, _round_up(pl.cdiv(n, 2), sub))
        return n
    return tn


def _neg_kl_partial_kernel(x1_ref, x2_ref, out_ref, *, inv_t, n_rows):
    tn = x1_ref.shape[0]

    # Upcast to f32 and apply 1/T as a multiply (not a divide).
    x1 = x1_ref[...].astype(jnp.float32) * inv_t
    x2 = x2_ref[...].astype(jnp.float32) * inv_t

    # Softmax pieces along the class (lane) axis.  With z = x - max(x) every
    # exp is <= 1, so even garbage rows of a ragged last tile stay finite.
    m1 = jnp.max(x1, axis=-1, keepdims=True)
    z1 = x1 - m1
    lse1 = jnp.log(jnp.sum(jnp.exp(z1), axis=-1, keepdims=True))   # (TN, 1)

    m2 = jnp.max(x2, axis=-1, keepdims=True)
    z2 = x2 - m2
    e2 = jnp.exp(z2)
    s2 = jnp.sum(e2, axis=-1, keepdims=True)                       # (TN, 1)

    # Algebraic per-row KL (t = e2/s2):
    #   sum_c t*(log t - logp) = (1/s2) * sum_c e2*(z2 - z1) + lse1 - log(s2)
    r = jnp.sum(e2 * (z2 - z1), axis=-1, keepdims=True)            # (TN, 1)
    row_kl = r * pl.reciprocal(s2, approx=False) + (lse1 - jnp.log(s2))

    # Zero out rows past the true batch size (only the ragged last tile has
    # any).  Applied before the tile-level sum so garbage cannot leak.
    row_start = pl.program_id(0) * tn
    row_ids = lax.broadcasted_iota(jnp.int32, (tn, 1), 0) + row_start
    row_kl = jnp.where(row_ids < n_rows, row_kl, 0.0)

    # Lane-dense per-tile partial (unmasked full-row store).
    out_ref[...] = jnp.full(out_ref.shape, jnp.sum(row_kl), dtype=out_ref.dtype)


def negated_kl_div_loss(output_1, output_2, temperature=1.0, block_rows=None):
    assert output_1.shape == output_2.shape and output_1.ndim == 2
    n, c = output_1.shape
    itemsize = jnp.dtype(output_1.dtype).itemsize
    sub = _sublane(itemsize)
    vmem_capacity = _vmem_capacity_bytes()

    if block_rows is None:
        tn = _pick_block_rows(n, c, itemsize, vmem_capacity)
    else:
        tn = int(block_rows)
        if tn < n:
            tn = max(sub, (tn // sub) * sub)   # keep sublane alignment
        else:
            tn = n                              # full-batch block is always legal
    num_tiles = pl.cdiv(n, tn)

    kernel = functools.partial(
        _neg_kl_partial_kernel,
        inv_t=1.0 / float(temperature),
        n_rows=n,
    )

    partials = pl.pallas_call(
        kernel,
        out_shape=jax.ShapeDtypeStruct((num_tiles, _LANES), jnp.float32),
        grid_spec=pltpu.PrefetchScalarGridSpec(
            num_scalar_prefetch=0,
            grid=(num_tiles,),
            in_specs=[
                pl.BlockSpec((tn, c), lambda i: (i, 0)),
                pl.BlockSpec((tn, c), lambda i: (i, 0)),
            ],
            out_specs=pl.BlockSpec((1, _LANES), lambda i: (i, 0)),
        ),
        compiler_params=pltpu.CompilerParams(
            dimension_semantics=("parallel",),
            vmem_limit_bytes=int(vmem_capacity * 3 // 4),
        ),
    )(output_1, output_2)

    # Tiny epilogue outside the kernel: sum per-tile partials, batchmean, negate.
    return -(jnp.sum(partials[:, 0]) / jnp.float32(n))


def _reference(output_1, output_2, temperature=1.0):
    x1 = output_1.astype(jnp.float32) / temperature
    x2 = output_2.astype(jnp.float32) / temperature
    logp = jax.nn.log_softmax(x1, axis=1)
    t = jax.nn.softmax(x2, axis=1)
    kl = jnp.sum(t * (jnp.log(t) - logp)) / output_1.shape[0]
    return -kl


if __name__ == "__main__":
    key = jax.random.PRNGKey(0)
    k1, k2, k3, k4, k5, k6 = jax.random.split(key, 6)

    # Test 1: small single-tile (batch=8, classes=128), T=1.
    N, C = 8, 128
    a = jax.random.normal(k1, (N, C), dtype=jnp.float32)
    b = jax.random.normal(k2, (N, C), dtype=jnp.float32)
    got = jax.block_until_ready(negated_kl_div_loss(a, b, temperature=1.0))
    want = _reference(a, b, temperature=1.0)
    assert jnp.allclose(got, want, atol=1e-5, rtol=1e-5), (got, want)

    # Test 2: multi-tile batch with a ragged last tile (masking path),
    # explicit block_rows and a non-unit temperature.
    N2, C2 = 20, 256
    a2 = jax.random.normal(k3, (N2, C2), dtype=jnp.float32)
    b2 = jax.random.normal(k4, (N2, C2), dtype=jnp.float32)
    got2 = jax.block_until_ready(
        negated_kl_div_loss(a2, b2, temperature=2.0, block_rows=8))
    want2 = _reference(a2, b2, temperature=2.0)
    assert jnp.allclose(got2, want2, atol=1e-5, rtol=1e-5), (got2, want2)

    # Test 3: bf16 logits in HBM (halved DMA traffic); math stays in f32.
    a3 = a.astype(jnp.bfloat16)
    b3 = b.astype(jnp.bfloat16)
    got3 = jax.block_until_ready(negated_kl_div_loss(a3, b3, temperature=1.0))
    want3 = _reference(a3, b3, temperature=1.0)
    assert jnp.allclose(got3, want3, atol=1e-5, rtol=1e-5), (got3, want3)

    # Test 4: auto-tiled batch — exercises the >=2-tile split (dual-TC path)
    # with a sub-unit temperature.
    N4, C4 = 48, 128
    a4 = jax.random.normal(k5, (N4, C4), dtype=jnp.float32)
    b4 = jax.random.normal(k6, (N4, C4), dtype=jnp.float32)
    got4 = jax.block_until_ready(negated_kl_div_loss(a4, b4, temperature=0.5))
    want4 = _reference(a4, b4, temperature=0.5)
    assert jnp.allclose(got4, want4, atol=1e-5, rtol=1e-5), (got4, want4)

    print("KERNEL_OK")
</pallas_src>

<mosaic_0001>
module attributes {stable_mosaic.version = 11 : i64} {
  func.func @_neg_kl_partial_kernel(%arg0: i32, %arg1: memref<8x128xf32, #tpu.memory_space<vmem>>, %arg2: memref<8x128xf32, #tpu.memory_space<vmem>>, %arg3: memref<1x128xf32, #tpu.memory_space<vmem>>) attributes {dimension_semantics = [#tpu.dimension_semantics<parallel>], iteration_bounds = array<i64: 1>, scalar_prefetch = 0 : i64, scratch_operands = 0 : i64, tpu.core_type = #tpu.core_type<tc>, window_params = [{transform_indices = @transform_0, window_bounds = array<i64: 8, 128>}, {transform_indices = @transform_1, window_bounds = array<i64: 8, 128>}, {transform_indices = @transform_2, window_bounds = array<i64: 1, 128>}]} {
    %c0 = arith.constant 0 : index
    %c0_0 = arith.constant 0 : index
    %0 = vector.load %arg1[%c0, %c0_0] : memref<8x128xf32, #tpu.memory_space<vmem>>, vector<8x128xf32>
    %cst = arith.constant 1.000000e+00 : f32
    %1 = vector.broadcast %cst : f32 to vector<8x128xf32>
    %2 = arith.mulf %0, %1 : vector<8x128xf32>
    %c0_1 = arith.constant 0 : index
    %c0_2 = arith.constant 0 : index
    %3 = vector.load %arg2[%c0_1, %c0_2] : memref<8x128xf32, #tpu.memory_space<vmem>>, vector<8x128xf32>
    %cst_3 = arith.constant 1.000000e+00 : f32
    %4 = vector.broadcast %cst_3 : f32 to vector<8x128xf32>
    %5 = arith.mulf %3, %4 : vector<8x128xf32>
    %cst_4 = arith.constant dense<0xFF800000> : vector<8xf32>
    %6 = vector.multi_reduction <maximumf>, %2, %cst_4 [1] : vector<8x128xf32> to vector<8xf32>
    %7 = vector.shape_cast %6 : vector<8xf32> to vector<8x1xf32>
    %8 = vector.broadcast %7 : vector<8x1xf32> to vector<8x128xf32>
    %9 = arith.subf %2, %8 : vector<8x128xf32>
    %10 = math.exp %9 : vector<8x128xf32>
    %cst_5 = arith.constant dense<0.000000e+00> : vector<8xf32>
    %11 = vector.multi_reduction <add>, %10, %cst_5 [1] : vector<8x128xf32> to vector<8xf32>
    %12 = vector.shape_cast %11 : vector<8xf32> to vector<8x1xf32>
    %13 = math.log %12 : vector<8x1xf32>
    %cst_6 = arith.constant dense<0xFF800000> : vector<8xf32>
    %14 = vector.multi_reduction <maximumf>, %5, %cst_6 [1] : vector<8x128xf32> to vector<8xf32>
    %15 = vector.shape_cast %14 : vector<8xf32> to vector<8x1xf32>
    %16 = vector.broadcast %15 : vector<8x1xf32> to vector<8x128xf32>
    %17 = arith.subf %5, %16 : vector<8x128xf32>
    %18 = math.exp %17 : vector<8x128xf32>
    %cst_7 = arith.constant dense<0.000000e+00> : vector<8xf32>
    %19 = vector.multi_reduction <add>, %18, %cst_7 [1] : vector<8x128xf32> to vector<8xf32>
    %20 = vector.shape_cast %19 : vector<8xf32> to vector<8x1xf32>
    %21 = arith.subf %17, %9 : vector<8x128xf32>
    %22 = arith.mulf %18, %21 : vector<8x128xf32>
    %cst_8 = arith.constant dense<0.000000e+00> : vector<8xf32>
    %23 = vector.multi_reduction <add>, %22, %cst_8 [1] : vector<8x128xf32> to vector<8xf32>
    %24 = vector.shape_cast %23 : vector<8xf32> to vector<8x1xf32>
    %25 = tpu.reciprocal %20 : vector<8x1xf32> -> vector<8x1xf32>
    %26 = arith.mulf %24, %25 : vector<8x1xf32>
    %27 = math.log %20 : vector<8x1xf32>
    %28 = arith.subf %13, %27 : vector<8x1xf32>
    %29 = arith.addf %26, %28 : vector<8x1xf32>
    %c8_i32 = arith.constant 8 : i32
    %30 = arith.muli %arg0, %c8_i32 : i32
    %31 = tpu.iota {dimensions = array<i32: 0>} : vector<8x1xi32>
    %32 = vector.broadcast %30 : i32 to vector<8x1xi32>
    %33 = arith.addi %31, %32 : vector<8x1xi32>
    %c8_i32_9 = arith.constant 8 : i32
    %34 = vector.broadcast %c8_i32_9 : i32 to vector<8x1xi32>
    %35 = arith.cmpi slt, %33, %34 : vector<8x1xi32>
    %cst_10 = arith.constant 0.000000e+00 : f32
    %36 = vector.broadcast %cst_10 : f32 to vector<8x1xf32>
    %37 = arith.select %35, %29, %36 : vector<8x1xi1>, vector<8x1xf32>
    %38 = vector.shape_cast %37 : vector<8x1xf32> to vector<1x8x1xf32>
    %cst_11 = arith.constant dense<0.000000e+00> : vector<1xf32>
    %39 = vector.multi_reduction <add>, %38, %cst_11 [1, 2] : vector<1x8x1xf32> to vector<1xf32>
    %40 = vector.shape_cast %39 : vector<1xf32> to vector<1x1x1xf32>
    %41 = vector.extract %40[0, 0, 0] : f32 from vector<1x1x1xf32>
    %42 = vector.broadcast %41 : f32 to vector<1x128xf32>
    %c0_12 = arith.constant 0 : index
    %c0_13 = arith.constant 0 : index
    %43 = vector.load %arg3[%c0_12, %c0_13] : memref<1x128xf32, #tpu.memory_space<vmem>>, vector<1x128xf32>
    tpu.vector_store %arg3[%c0_12, %c0_13], %42 {strides = array<i32>} : memref<1x128xf32, #tpu.memory_space<vmem>>, vector<1x128xf32>,
    return
  }
  func.func @transform_0(%arg0: i32) -> (i32, i32) {
    %c0_i32 = arith.constant 0 : i32
    %c0_i32_0 = arith.constant 0 : i32
    return %arg0, %c0_i32 : i32, i32
  }
  func.func @transform_1(%arg0: i32) -> (i32, i32) {
    %c0_i32 = arith.constant 0 : i32
    %c0_i32_0 = arith.constant 0 : i32
    return %arg0, %c0_i32 : i32, i32
  }
  func.func @transform_2(%arg0: i32) -> (i32, i32) {
    %c0_i32 = arith.constant 0 : i32
    %c0_i32_0 = arith.constant 0 : i32
    return %arg0, %c0_i32 : i32, i32
  }
}

</mosaic_0001>

<llo_original>
// kernel: tpu_custom_call.1
$region0: #{tpu_custom_call.1}
  #allocation0 [shape = 'u32[]', space=smem, size = 0x4, offset = 0x4, fixed_abs, tag = 'smem constant byte address 0x4 - core index']
  #allocation1 [shape = 'u32[72,128]{1,0:T(1,128)}', space=vmem, size = 0x9000, scoped, tag = 'internal scratch']
  %s0 = inlined_call_operand.hbm [shape: f32[8,128], index: 0, kind: input, shape index: {}]
  %s1 = inlined_call_operand.hbm [shape: f32[8,128], index: 1, kind: input, shape index: {}]
  %s2 = inlined_call_operand.hbm [shape: f32[1,128], index: 2, kind: output, shape index: {}]
  %s3 = sld [smem:[#allocation0]]
  $region26: #{tpu_custom_call.1} parent=0
    _
  %s5 = ssub.s32 1, %s3
  %s6 = scalar_select 0, %s5, %s3
  $region1: #{tpu_custom_call.1} parent=0
    #allocation2 [shape = 'u8[4096]{0}', space=vmem, size = 0x1000, scoped, tag = 'input window, operand 0, single buffered']
    #allocation3 [shape = 's32[1]{0}', space=sflag, size = 0x4, scoped, tag = 'scoped memory for tpu_custom_call.1']
    #allocation4 [shape = 's32[1]{0}', space=sflag, size = 0x4, scoped, tag = 'scoped memory for tpu_custom_call.1']
    #allocation5 [shape = 'u8[4096]{0}', space=vmem, size = 0x1000, scoped, tag = 'input window, operand 1, single buffered']
    #allocation6 [shape = 's32[1]{0}', space=sflag, size = 0x4, scoped, tag = 'scoped memory for tpu_custom_call.1']
    #allocation7 [shape = 'u8[512]{0}', space=vmem, size = 0x400, scoped, tag = 'output window, operand 0, single buffered']
    %7 = vsyncpa [#allocation3], 0
    %8 = vsyncpa [#allocation6], 0
    %9 = vsyncpa [#allocation4], 0
    // Predicated region
    $region2: #{tpu_custom_call.1} parent=1 // pred_check
      _
    $region3: #{tpu_custom_call.1} parent=1 // pred_check_branch
      %11 = sbr.rel (0) target = $region5
    $region4: #{tpu_custom_call.1} parent=1 // pred_region
      %13 = vsyncadd [#allocation3], 0
      %s15 = sshll.u32 %s0, 4
      %s16 = int_to_ptr.hbm [resolvable:$true] %s15
      %s17 = sshll.u32 [#allocation2], 4
      %s18 = int_to_ptr.vmem [resolvable:$true] %s17
      %20 = dma.hbm_to_vmem [thread:$0]  %s16, 128, %s18, [#allocation3]
    $region5: #{tpu_custom_call.1} parent=1 // pred_fallthru
      _
    // Predicated region
    $region6: #{tpu_custom_call.1} parent=1 // pred_check
      _
    $region7: #{tpu_custom_call.1} parent=1 // pred_check_branch
      %22 = sbr.rel (0) target = $region9
    $region8: #{tpu_custom_call.1} parent=1 // pred_region
      %24 = vsyncadd [#allocation6], 0
      %s26 = sshll.u32 %s1, 4
      %s27 = int_to_ptr.hbm [resolvable:$true] %s26
      %s28 = sshll.u32 [#allocation5], 4
      %s29 = int_to_ptr.vmem [resolvable:$true] %s28
      %31 = dma.hbm_to_vmem [thread:$0]  %s27, 128, %s29, [#allocation6]
    $region9: #{tpu_custom_call.1} parent=1 // pred_fallthru
      _
    // Predicated region
    $region10: #{tpu_custom_call.1} parent=1 // pred_check
      _
    $region11: #{tpu_custom_call.1} parent=1 // pred_check_branch
      %33 = sbr.rel (0) target = $region13
    $region12: #{tpu_custom_call.1} parent=1 // pred_region
      %35 = dma.done [#allocation3], 128
    $region13: #{tpu_custom_call.1} parent=1 // pred_fallthru
      _
    // Predicated region
    $region14: #{tpu_custom_call.1} parent=1 // pred_check
      _
    $region15: #{tpu_custom_call.1} parent=1 // pred_check_branch
      %37 = sbr.rel (0) target = $region17
    $region16: #{tpu_custom_call.1} parent=1 // pred_region
      %39 = dma.done [#allocation6], 128
    $region17: #{tpu_custom_call.1} parent=1 // pred_fallthru
      _
    %v40 = vld [vmem:[#allocation2] sm:$0xff]
    %v41 = vld [vmem:[#allocation5] sm:$0xff]
    %42 = vmax.xlane.f32.xlu0 %v40
    %v43 = vpop.xlane.xlu0 %42
    %v44 = vsub.f32 %v40, %v43
    %v45 = vmul.f32 %v44, 1.442695
    %v46 = vpow.pop %v45
    %47 = vadd.xlane.f32.xlu0 %v46
    %v48 = vpop.xlane.xlu0 %47
    %v49 = vlog2.pop %v48
    %v50 = vmul.f32 %v49, 0.6931472
    %51 = vmax.xlane.f32.xlu0 %v41
    %v52 = vpop.xlane.xlu0 %51
    %v53 = vsub.f32 %v41, %v52
    %v54 = vmul.f32 %v53, 1.442695
    %v55 = vpow.pop %v54
    %56 = vadd.xlane.f32.xlu0 %v55
    %v57 = vpop.xlane.xlu0 %56
    %v58 = vsub.f32 %v53, %v44
    %v59 = vmul.f32 %v55, %v58
    %60 = vadd.xlane.f32.xlu0 %v59
    %v61 = vpop.xlane.xlu0 %60
    %v62 = vrcp.pop %v57
    %v63 = vmul.f32 %v57, %v62
    %v64 = vsub.f32 1.0, %v63
    %v65 = vmul.f32 %v62, %v64
    %v66 = vadd.f32 %v62, %v65
    %vm67 = vweird.f32 %v57
    %vm68 = vweird.f32 %v62
    %vm69 = vmor %vm67, %vm68
    %v70 = vsel %vm69, %v62, %v66
    %v71 = vand.u32 2147483647, %v57
    %vm72 = vcmp.eq.f32.partialorder %v71, 8.507059e+37
    %v73 = vand.u32 %v57, 2147483648
    %v74 = vor.u32 1.1754944e-38, %v73
    %v75 = vsel %vm72, %v74, %v70
    %v76 = vmul.f32 %v61, %v75
    %v77 = vlog2.pop %v57
    %v78 = vmul.f32 %v77, 0.6931472
    %v79 = vsub.f32 %v50, %v78
    %v80 = vadd.f32 %v76, %v79
    %s81 = smul.u32 0, 8
    %v82 = vlaneseq
    %v83 = vshrl.u32 %v82, 7
    %v84 = vstv %s81
    %v85 = vadd.s32 %v83, %v84
    %vm86 = vcmp.lt.s32.totalorder %v85, 8
    %v87 = vsel %vm86, %v80, 0.0
    %vm88 = vcmask 7168
    %v89 = vsel %vm88, %v87, 0.0
    %90 = vadd.xlane.f32.xlu0 %v89
    %v91 = vpop.xlane.xlu0 %90
    %v92 = vrot.slane %v91, 4
    %v93 = vadd.f32 %v91, %v92
    %v94 = vrot.slane %v93, 2
    %v95 = vadd.f32 %v93, %v94
    %v96 = vrot.slane %v95, 1
    %v97 = vadd.f32 %v95, %v96
    %s98 = vtos %v97
    %v99 = vstv %s98
    %100 = vst [vmem:[#allocation7] sm:$0x1] %v99
    // Predicated region
    $region18: #{tpu_custom_call.1} parent=1 // pred_check
      _
    $region19: #{tpu_custom_call.1} parent=1 // pred_check_branch
      %102 = sbr.rel (0) target = $region21
    $region20: #{tpu_custom_call.1} parent=1 // pred_region
      %104 = vsyncadd [#allocation4], 0
      %s106 = sshll.u32 [#allocation7], 4
      %s107 = int_to_ptr.vmem [resolvable:$true] %s106
      %s108 = sshll.u32 %s2, 4
      %s109 = int_to_ptr.hbm [resolvable:$true] %s108
      %111 = dma.vmem_to_hbm [thread:$0]  %s107, 16, %s109, [#allocation4]
    $region21: #{tpu_custom_call.1} parent=1 // pred_fallthru
      _
    // Predicated region
    $region22: #{tpu_custom_call.1} parent=1 // pred_check
      _
    $region23: #{tpu_custom_call.1} parent=1 // pred_check_branch
      %113 = sbr.rel (0) target = $region25
    $region24: #{tpu_custom_call.1} parent=1 // pred_region
      %115 = dma.done [#allocation4], 16
    $region25: #{tpu_custom_call.1} parent=1 // pred_fallthru
      _
    %116 = vsyncpa [#allocation3], 1
    %117 = vsyncpa [#allocation6], 1
    %118 = vsyncpa [#allocation4], 1

</llo_original>
